<compile_context>
chip_gen: v7x
topology: tpu7x:2x2x1
jax: 0.10.0
libtpu: 0.0.40
codegen_flags: <defaults>
</compile_context>

<pallas_src>
import functools

import jax
import jax.numpy as jnp
from jax import lax
from jax.experimental import pallas as pl
from jax.experimental.pallas import tpu as pltpu


def _adain_kernel(c_ref, s_ref, o_ref, *, epsilon: float, inv_hw: float):
    # Block shape: (row_tile, H*W).  Rows are independent instances.
    c = c_ref[...].astype(jnp.float32)
    s = s_ref[...].astype(jnp.float32)

    # mi(x) = sum over spatial / (H*W)
    mu_c = jnp.sum(c, axis=-1, keepdims=True) * inv_hw
    mu_s = jnp.sum(s, axis=-1, keepdims=True) * inv_hw

    # sigma(x)^2 = mean((x - mi)^2) + eps  (the reference adds eps per element
    # inside the sum; after the /(H*W) that is algebraically identical).
    c_dev = c - mu_c
    s_dev = s - mu_s
    var_c = jnp.sum(c_dev * c_dev, axis=-1, keepdims=True) * inv_hw + epsilon
    var_s = jnp.sum(s_dev * s_dev, axis=-1, keepdims=True) * inv_hw + epsilon

    # out = sigma_s * (c - mu_c) / sigma_c + mu_s
    #     = (c - mu_c) * (sigma_s * rsqrt(var_c)) + mu_s
    # sqrt/rsqrt run on the EUP (separate VLIW slot) on tiny (rows, 1) tensors;
    # the elementwise hot path is a single mul + add (no per-element divide).
    scale = jnp.sqrt(var_s) * lax.rsqrt(var_c)
    o_ref[...] = (c_dev * scale + mu_s).astype(o_ref.dtype)


def _choose_row_tile(rows: int, hw: int, itemsize: int) -> int:
    """Largest VMEM-budgeted row tile; prefer exact divisors of `rows`."""
    vmem_budget = 40 << 20
    # Per row of a block: content + style + output pipeline buffers (double
    # buffered, input dtype) plus ~4 live block-sized f32 temporaries.
    bytes_per_row = hw * (6 * itemsize + 16)
    max_tile = (vmem_budget // max(bytes_per_row, 1)) // 8 * 8
    max_tile = int(max(8, min(max_tile, 2048)))

    if rows <= max_tile:
        # Single block; block dim == full array dim, so any row count is legal.
        return rows

    # Prefer a tile that divides the row count exactly: every grid step is
    # then a full, unmasked (lane-dense) block with a uniform pipeline.
    threshold = max(64, max_tile // 4)
    t = max_tile
    while t >= threshold:
        if rows % t == 0:
            return t
        t -= 8
    # Fall back to the largest tile; Pallas masks the ragged boundary block.
    return max_tile


def adain(content: jax.Array, style: jax.Array, epsilon: float = 1e-5) -> jax.Array:
    """AdaIN forward. content, style: (B, C, H, W) with identical shapes."""
    assert content.shape == style.shape, "content/style must have identical shapes"
    B, C, H, W = content.shape
    rows = B * C
    hw = H * W

    # TODO(synk): for extreme spatial sizes where even an 8-row block exceeds
    # VMEM (H*W >~ 400k f32 elements), a second grid axis over H*W with a
    # two-pass (stats, then normalize) reduction would be required.

    c2 = content.reshape(rows, hw)
    s2 = style.reshape(rows, hw)

    row_tile = _choose_row_tile(rows, hw, jnp.dtype(content.dtype).itemsize)
    grid = (pl.cdiv(rows, row_tile),)

    kernel = functools.partial(_adain_kernel, epsilon=float(epsilon), inv_hw=1.0 / hw)

    out2 = pl.pallas_call(
        kernel,
        out_shape=jax.ShapeDtypeStruct((rows, hw), content.dtype),
        grid_spec=pltpu.PrefetchScalarGridSpec(
            num_scalar_prefetch=0,
            grid=grid,
            in_specs=[
                pl.BlockSpec((row_tile, hw), lambda i: (i, 0)),
                pl.BlockSpec((row_tile, hw), lambda i: (i, 0)),
            ],
            out_specs=pl.BlockSpec((row_tile, hw), lambda i: (i, 0)),
        ),
        compiler_params=pltpu.CompilerParams(
            dimension_semantics=("parallel",),   # rows shard across TCs (v7x megacore)
            vmem_limit_bytes=48 << 20,           # below v7x's 64 MiB physical VMEM
        ),
    )(c2, s2)

    return out2.reshape(B, C, H, W)


def _adain_ref(content, style, epsilon=1e-5):
    def mi(x):
        return jnp.sum(x, axis=(2, 3), keepdims=True) / (x.shape[2] * x.shape[3])

    def sigma(x):
        return jnp.sqrt(
            jnp.sum((x - mi(x)) ** 2 + epsilon, axis=(2, 3), keepdims=True)
            / (x.shape[2] * x.shape[3])
        )

    return sigma(style) * (content - mi(content)) / sigma(content) + mi(style)


if __name__ == "__main__":
    key = jax.random.PRNGKey(0)
    kc, ks = jax.random.split(key)
    B, C, H, W = 2, 4, 16, 16
    content = jax.random.normal(kc, (B, C, H, W), dtype=jnp.float32)
    style = jax.random.normal(ks, (B, C, H, W), dtype=jnp.float32) * 2.0 + 0.5

    out = adain(content, style)
    jax.block_until_ready(out)

    ref = _adain_ref(content, style)
    assert out.shape == (B, C, H, W)
    assert jnp.allclose(out, ref, atol=1e-5, rtol=1e-5), "mismatch vs reference"

    print("KERNEL_OK")
</pallas_src>

<mosaic_0001>
module attributes {stable_mosaic.version = 11 : i64} {
  func.func @_adain_kernel(%arg0: i32, %arg1: memref<8x256xf32, #tpu.memory_space<vmem>>, %arg2: memref<8x256xf32, #tpu.memory_space<vmem>>, %arg3: memref<8x256xf32, #tpu.memory_space<vmem>>) attributes {dimension_semantics = [#tpu.dimension_semantics<parallel>], iteration_bounds = array<i64: 1>, scalar_prefetch = 0 : i64, scratch_operands = 0 : i64, tpu.core_type = #tpu.core_type<tc>, window_params = [{transform_indices = @transform_0, window_bounds = array<i64: 8, 256>}, {transform_indices = @transform_1, window_bounds = array<i64: 8, 256>}, {transform_indices = @transform_2, window_bounds = array<i64: 8, 256>}]} {
    %c0 = arith.constant 0 : index
    %c0_0 = arith.constant 0 : index
    %0 = vector.load %arg1[%c0, %c0_0] : memref<8x256xf32, #tpu.memory_space<vmem>>, vector<8x256xf32>
    %c0_1 = arith.constant 0 : index
    %c0_2 = arith.constant 0 : index
    %1 = vector.load %arg2[%c0_1, %c0_2] : memref<8x256xf32, #tpu.memory_space<vmem>>, vector<8x256xf32>
    %cst = arith.constant dense<0.000000e+00> : vector<8xf32>
    %2 = vector.multi_reduction <add>, %0, %cst [1] : vector<8x256xf32> to vector<8xf32>
    %3 = vector.shape_cast %2 : vector<8xf32> to vector<8x1xf32>
    %cst_3 = arith.constant 3.906250e-03 : f32
    %4 = vector.broadcast %cst_3 : f32 to vector<8x1xf32>
    %5 = arith.mulf %3, %4 : vector<8x1xf32>
    %cst_4 = arith.constant dense<0.000000e+00> : vector<8xf32>
    %6 = vector.multi_reduction <add>, %1, %cst_4 [1] : vector<8x256xf32> to vector<8xf32>
    %7 = vector.shape_cast %6 : vector<8xf32> to vector<8x1xf32>
    %cst_5 = arith.constant 3.906250e-03 : f32
    %8 = vector.broadcast %cst_5 : f32 to vector<8x1xf32>
    %9 = arith.mulf %7, %8 : vector<8x1xf32>
    %10 = vector.broadcast %5 : vector<8x1xf32> to vector<8x256xf32>
    %11 = arith.subf %0, %10 : vector<8x256xf32>
    %12 = vector.broadcast %9 : vector<8x1xf32> to vector<8x256xf32>
    %13 = arith.subf %1, %12 : vector<8x256xf32>
    %14 = arith.mulf %11, %11 : vector<8x256xf32>
    %cst_6 = arith.constant dense<0.000000e+00> : vector<8xf32>
    %15 = vector.multi_reduction <add>, %14, %cst_6 [1] : vector<8x256xf32> to vector<8xf32>
    %16 = vector.shape_cast %15 : vector<8xf32> to vector<8x1xf32>
    %cst_7 = arith.constant 3.906250e-03 : f32
    %17 = vector.broadcast %cst_7 : f32 to vector<8x1xf32>
    %18 = arith.mulf %16, %17 : vector<8x1xf32>
    %cst_8 = arith.constant 9.99999974E-6 : f32
    %19 = vector.broadcast %cst_8 : f32 to vector<8x1xf32>
    %20 = arith.addf %18, %19 : vector<8x1xf32>
    %21 = arith.mulf %13, %13 : vector<8x256xf32>
    %cst_9 = arith.constant dense<0.000000e+00> : vector<8xf32>
    %22 = vector.multi_reduction <add>, %21, %cst_9 [1] : vector<8x256xf32> to vector<8xf32>
    %23 = vector.shape_cast %22 : vector<8xf32> to vector<8x1xf32>
    %cst_10 = arith.constant 3.906250e-03 : f32
    %24 = vector.broadcast %cst_10 : f32 to vector<8x1xf32>
    %25 = arith.mulf %23, %24 : vector<8x1xf32>
    %cst_11 = arith.constant 9.99999974E-6 : f32
    %26 = vector.broadcast %cst_11 : f32 to vector<8x1xf32>
    %27 = arith.addf %25, %26 : vector<8x1xf32>
    %28 = math.sqrt %27 : vector<8x1xf32>
    %29 = math.rsqrt %20 : vector<8x1xf32>
    %30 = arith.mulf %28, %29 : vector<8x1xf32>
    %31 = vector.broadcast %30 : vector<8x1xf32> to vector<8x256xf32>
    %32 = arith.mulf %11, %31 : vector<8x256xf32>
    %33 = vector.broadcast %9 : vector<8x1xf32> to vector<8x256xf32>
    %34 = arith.addf %32, %33 : vector<8x256xf32>
    %c0_12 = arith.constant 0 : index
    %c0_13 = arith.constant 0 : index
    %35 = vector.load %arg3[%c0_12, %c0_13] : memref<8x256xf32, #tpu.memory_space<vmem>>, vector<8x256xf32>
    tpu.vector_store %arg3[%c0_12, %c0_13], %34 {strides = array<i32>} : memref<8x256xf32, #tpu.memory_space<vmem>>, vector<8x256xf32>,
    return
  }
  func.func @transform_0(%arg0: i32) -> (i32, i32) {
    %c0_i32 = arith.constant 0 : i32
    %c0_i32_0 = arith.constant 0 : i32
    return %arg0, %c0_i32 : i32, i32
  }
  func.func @transform_1(%arg0: i32) -> (i32, i32) {
    %c0_i32 = arith.constant 0 : i32
    %c0_i32_0 = arith.constant 0 : i32
    return %arg0, %c0_i32 : i32, i32
  }
  func.func @transform_2(%arg0: i32) -> (i32, i32) {
    %c0_i32 = arith.constant 0 : i32
    %c0_i32_0 = arith.constant 0 : i32
    return %arg0, %c0_i32 : i32, i32
  }
}

</mosaic_0001>

<llo_original>
// kernel: tpu_custom_call.1
$region0: #{tpu_custom_call.1}
  #allocation0 [shape = 'u32[]', space=smem, size = 0x4, offset = 0x4, fixed_abs, tag = 'smem constant byte address 0x4 - core index']
  #allocation1 [shape = 'u32[144,128]{1,0:T(1,128)}', space=vmem, size = 0x12000, scoped, tag = 'internal scratch']
  %s0 = inlined_call_operand.hbm [shape: f32[8,256], index: 0, kind: input, shape index: {}]
  %s1 = inlined_call_operand.hbm [shape: f32[8,256], index: 1, kind: input, shape index: {}]
  %s2 = inlined_call_operand.hbm [shape: f32[8,256], index: 2, kind: output, shape index: {}]
  %s3 = sld [smem:[#allocation0]]
  $region26: #{tpu_custom_call.1} parent=0
    _
  %s5 = ssub.s32 1, %s3
  %s6 = scalar_select 0, %s5, %s3
  $region1: #{tpu_custom_call.1} parent=0
    #allocation2 [shape = 'u8[8192]{0}', space=vmem, size = 0x2000, scoped, tag = 'input window, operand 0, single buffered']
    #allocation3 [shape = 's32[1]{0}', space=sflag, size = 0x4, scoped, tag = 'scoped memory for tpu_custom_call.1']
    #allocation4 [shape = 's32[1]{0}', space=sflag, size = 0x4, scoped, tag = 'scoped memory for tpu_custom_call.1']
    #allocation5 [shape = 'u8[8192]{0}', space=vmem, size = 0x2000, scoped, tag = 'input window, operand 1, single buffered']
    #allocation6 [shape = 's32[1]{0}', space=sflag, size = 0x4, scoped, tag = 'scoped memory for tpu_custom_call.1']
    #allocation7 [shape = 'u8[8192]{0}', space=vmem, size = 0x2000, scoped, tag = 'output window, operand 0, single buffered']
    %7 = vsyncpa [#allocation3], 0
    %8 = vsyncpa [#allocation6], 0
    %9 = vsyncpa [#allocation4], 0
    // Predicated region
    $region2: #{tpu_custom_call.1} parent=1 // pred_check
      _
    $region3: #{tpu_custom_call.1} parent=1 // pred_check_branch
      %11 = sbr.rel (0) target = $region5
    $region4: #{tpu_custom_call.1} parent=1 // pred_region
      %s13 = ssub.s32 256, 256
      %14 = vsyncadd [#allocation3], %s13
      %s16 = sshll.u32 [#allocation2], 4
      %s17 = int_to_ptr.vmem [resolvable:$true] %s16
      %19 = dma.hbm_to_vmem [thread:$0]  %s0, 256, %s17, [#allocation3]
    $region5: #{tpu_custom_call.1} parent=1 // pred_fallthru
      _
    // Predicated region
    $region6: #{tpu_custom_call.1} parent=1 // pred_check
      _
    $region7: #{tpu_custom_call.1} parent=1 // pred_check_branch
      %21 = sbr.rel (0) target = $region9
    $region8: #{tpu_custom_call.1} parent=1 // pred_region
      %s23 = ssub.s32 256, 256
      %24 = vsyncadd [#allocation6], %s23
      %s26 = sshll.u32 [#allocation5], 4
      %s27 = int_to_ptr.vmem [resolvable:$true] %s26
      %29 = dma.hbm_to_vmem [thread:$0]  %s1, 256, %s27, [#allocation6]
    $region9: #{tpu_custom_call.1} parent=1 // pred_fallthru
      _
    // Predicated region
    $region10: #{tpu_custom_call.1} parent=1 // pred_check
      _
    $region11: #{tpu_custom_call.1} parent=1 // pred_check_branch
      %31 = sbr.rel (0) target = $region13
    $region12: #{tpu_custom_call.1} parent=1 // pred_region
      %32 = dma.done [#allocation3], 256
    $region13: #{tpu_custom_call.1} parent=1 // pred_fallthru
      _
    // Predicated region
    $region14: #{tpu_custom_call.1} parent=1 // pred_check
      _
    $region15: #{tpu_custom_call.1} parent=1 // pred_check_branch
      %34 = sbr.rel (0) target = $region17
    $region16: #{tpu_custom_call.1} parent=1 // pred_region
      %35 = dma.done [#allocation6], 256
    $region17: #{tpu_custom_call.1} parent=1 // pred_fallthru
      _
    %v36 = vld [vmem:[#allocation2] sm:$0xff]
    %v37 = vld [vmem:[#allocation2 + $0x8] sm:$0xff]
    %v38 = vld [vmem:[#allocation5] sm:$0xff]
    %v39 = vld [vmem:[#allocation5 + $0x8] sm:$0xff]
    %v40 = vadd.f32 %v36, %v37
    %41 = vadd.xlane.f32.xlu0 %v40
    %v42 = vpop.xlane.xlu0 %41
    %v43 = vmul.f32 %v42, 0.00390625
    %v44 = vadd.f32 %v38, %v39
    %45 = vadd.xlane.f32.xlu0 %v44
    %v46 = vpop.xlane.xlu0 %45
    %v47 = vmul.f32 %v46, 0.00390625
    %v48 = vsub.f32 %v36, %v43
    %v49 = vsub.f32 %v37, %v43
    %v50 = vsub.f32 %v38, %v47
    %v51 = vsub.f32 %v39, %v47
    %v52 = vmul.f32 %v48, %v48
    %v53 = vmul.f32 %v49, %v49
    %v54 = vadd.f32 %v52, %v53
    %55 = vadd.xlane.f32.xlu0 %v54
    %v56 = vpop.xlane.xlu0 %55
    %v57 = vmul.f32 %v56, 0.00390625
    %v58 = vadd.f32 %v57, 1e-05
    %v59 = vmul.f32 %v50, %v50
    %v60 = vmul.f32 %v51, %v51
    %v61 = vadd.f32 %v59, %v60
    %62 = vadd.xlane.f32.xlu0 %v61
    %v63 = vpop.xlane.xlu0 %62
    %v64 = vmul.f32 %v63, 0.00390625
    %v65 = vadd.f32 %v64, 1e-05
    %v66 = vrsqrt.pop %v65
    %v67 = vmul.f32 %v65, %v66
    %vm68 = vcmp.eq.f32.partialorder %v65, inf
    %v69 = vsel %vm68, %v65, %v67
    %vm70 = vcmp.eq.f32.partialorder %v65, 0.0
    %v71 = vand.u32 %v65, 2147483648
    %v72 = vsel %vm70, %v71, %v69
    %v73 = vrsqrt.pop %v58
    %v74 = vmul.f32 %v72, %v73
    %v75 = vmul.f32 %v48, %v74
    %v76 = vmul.f32 %v49, %v74
    %v77 = vadd.f32 %v75, %v47
    %v78 = vadd.f32 %v76, %v47
    %79 = vst [vmem:[#allocation7] sm:$0xff] %v77
    %80 = vst [vmem:[#allocation7 + $0x8] sm:$0xff] %v78
    // Predicated region
    $region18: #{tpu_custom_call.1} parent=1 // pred_check
      _
    $region19: #{tpu_custom_call.1} parent=1 // pred_check_branch
      %82 = sbr.rel (0) target = $region21
    $region20: #{tpu_custom_call.1} parent=1 // pred_region
      %s84 = ssub.s32 256, 256
      %85 = vsyncadd [#allocation4], %s84
      %s87 = sshll.u32 [#allocation7], 4
      %s88 = int_to_ptr.vmem [resolvable:$true] %s87
      %90 = dma.vmem_to_hbm [thread:$0]  %s88, 256, %s2, [#allocation4]
    $region21: #{tpu_custom_call.1} parent=1 // pred_fallthru
      _
    // Predicated region
    $region22: #{tpu_custom_call.1} parent=1 // pred_check
      _
    $region23: #{tpu_custom_call.1} parent=1 // pred_check_branch
      %92 = sbr.rel (0) target = $region25
    $region24: #{tpu_custom_call.1} parent=1 // pred_region
      %93 = dma.done [#allocation4], 256
    $region25: #{tpu_custom_call.1} parent=1 // pred_fallthru
      _
    %94 = vsyncpa [#allocation3], 1
    %95 = vsyncpa [#allocation6], 1
    %96 = vsyncpa [#allocation4], 1

</llo_original>
